<compile_context>
chip_gen: v5e
topology: v5e:2x2
jax: 0.10.0
libtpu: 0.0.40
codegen_flags: <defaults>
</compile_context>

<pallas_src>
import math

import jax
import jax.numpy as jnp
from jax.experimental import pallas as pl
from jax.experimental.pallas import tpu as pltpu


_BLOCK_BYTE_BUDGET = 2 << 20        # ~2 MiB per block; in+out double-buffered ~8 MiB
_MIN_DMA_RUN_BYTES = 2048           # floor on contiguous bytes per HBM descriptor run
_MIN_SPLIT_BYTES = 1 << 20          # force >=2 grid steps above this size (v7x: 2 TCs)
_VMEM_LIMIT_FLOOR = 32 * 1024 * 1024
_VMEM_LIMIT_CAP = 48 * 1024 * 1024


def _prod(xs):
    out = 1
    for v in xs:
        out *= int(v)
    return out


def _ceil_to(v, m):
    return -(-int(v) // int(m)) * int(m)


def _pick(dim, unit, cap):
    """Tile an axis of extent `dim`: returns (tile, padded_extent).

    Valid tiles are the full extent or a multiple of `unit` (so blocks obey the
    TPU (8, 128) last-two-dims rule).  Aligned divisors are preferred (no
    padding); otherwise the axis is padded up to a multiple of the largest
    aligned tile <= cap.
    """
    dim, unit = int(dim), max(1, int(unit))
    cap = max(int(cap), unit)
    if dim <= cap:
        return dim, dim
    t = (cap // unit) * unit
    tt, steps = t, 0
    while tt >= unit and steps < 1024:       # bounded divisor search (no padding)
        if dim % tt == 0:
            return tt, dim
        tt -= unit
        steps += 1
    return t, _ceil_to(dim, t)


def _ensure_two_steps(axes, order, total_bytes):
    """Guarantee >= 2 grid steps for arrays above _MIN_SPLIT_BYTES so both
    TensorCores of a v7x chip get work (all grid axes are 'parallel').

    axes: dict name -> [orig_extent, padded_extent, tile, unit]; mutated in place.
    Only splits that introduce no extra padding are accepted.
    """
    grid = 1
    for orig, padded, tile, unit in axes.values():
        grid *= padded // tile
    if grid > 1 or total_bytes <= _MIN_SPLIT_BYTES:
        return
    for name in order:
        if name not in axes:
            continue
        orig, padded, tile, unit = axes[name]
        if tile <= max(unit, 1):
            continue
        new_tile, new_pad = _pick(orig, unit, max(unit, tile // 2))
        if new_tile < tile and new_pad == padded and padded // new_tile >= 2:
            axes[name][2] = new_tile
            return


def _transpose_call(in_shape, out_shape, in_block, out_block,
                    in_index, out_index, grid, kernel, dtype):
    isz = jnp.dtype(dtype).itemsize
    blk_bytes = (_prod(in_block) + _prod(out_block)) * isz
    # Explicit scoped-VMEM limit: v5e's default is only 16 MiB; blocks here are
    # sized so double-buffered residency stays well under v7x's 64 MiB physical.
    vmem_limit = int(min(max(3 * blk_bytes, _VMEM_LIMIT_FLOOR), _VMEM_LIMIT_CAP))
    total_bytes = (_prod(in_shape) + _prod(out_shape)) * isz
    # TODO(synk): consider pipeline_mode=pl.Buffered(3) on v7x if a bundle dump
    # shows exposed DMA latency; default double-buffering is kept here.
    return pl.pallas_call(
        kernel,
        out_shape=jax.ShapeDtypeStruct(out_shape, dtype),
        grid=grid,
        in_specs=[pl.BlockSpec(in_block, in_index)],
        out_specs=pl.BlockSpec(out_block, out_index),
        compiler_params=pltpu.CompilerParams(
            dimension_semantics=("parallel",) * len(grid),
            vmem_limit_bytes=vmem_limit),
        cost_estimate=pl.CostEstimate(
            flops=0, transcendentals=0, bytes_accessed=int(total_bytes)),
    )


def _pad_call_slice(x, in_cs, in_csp, out_cs, out_csp, in_block, out_block,
                    in_index, out_index, grid, kernel, out_shape):
    xc = x.reshape(in_cs)                      # layout-preserving adjacent-dim merge
    if in_csp != in_cs:
        xc = jnp.pad(xc, [(0, p - s) for p, s in zip(in_csp, in_cs)])
    yc = _transpose_call(in_csp, out_csp, in_block, out_block,
                         in_index, out_index, grid, kernel, x.dtype)(xc)
    if out_csp != out_cs:
        yc = yc[tuple(slice(0, s) for s in out_cs)]
    return yc.reshape(out_shape)               # layout-preserving adjacent-dim split


def _run_minor_swap(x, A, P, M, Q, out_shape):
    """T == 1: the swapped dim Q is the canonical minor (lane) axis.
    in view (A, P[, M], Q) -> out view (A, Q[, M], P); pure block transpose,
    with tp/tq multiples of 128 (both are lane axes)."""
    dt = x.dtype
    isz = jnp.dtype(dt).itemsize
    budget = max(8 * 128, _BLOCK_BYTE_BUDGET // isz)
    rf = max(1, _MIN_DMA_RUN_BYTES // isz)     # elements giving a >= 2 KiB HBM run
    have_m = M > 1

    bm_min = (M if M <= 8 else 8) if have_m else 1
    budget_pq = max(128, budget // bm_min)
    cap_side = max(rf, 128, int(math.isqrt(budget_pq)))
    tq, Qp = _pick(Q, 128, cap_side)                          # input lane axis
    tp, Pp = _pick(P, 128, max(rf, 128, budget_pq // max(1, tq)))   # output lane axis
    bm, Mp = _pick(M, 8, max(1, budget // (tp * tq))) if have_m else (1, 1)
    at, Ap = _pick(A, 1, max(1, budget // (tp * tq * bm)))

    axes = {"a": [A, Ap, at, 1], "p": [P, Pp, tp, 128], "q": [Q, Qp, tq, 128]}
    if have_m:
        axes["m"] = [M, Mp, bm, 8]
    order = ["a", "m"] + (["q", "p"] if tq >= tp else ["p", "q"])
    _ensure_two_steps(axes, order, _prod([Ap, Pp, Mp, Qp]) * isz)
    at, tp, tq = axes["a"][2], axes["p"][2], axes["q"][2]
    Ap, Pp, Qp = axes["a"][1], axes["p"][1], axes["q"][1]
    if have_m:
        bm, Mp = axes["m"][2], axes["m"][1]

    if have_m:
        in_cs, in_csp = (A, P, M, Q), (Ap, Pp, Mp, Qp)
        out_cs, out_csp = (A, Q, M, P), (Ap, Qp, Mp, Pp)
        in_block, out_block = (at, tp, bm, tq), (at, tq, bm, tp)
        grid = (Ap // at, Mp // bm, Pp // tp, Qp // tq)
        in_index = lambda a, m, p, q: (a, p, m, q)
        out_index = lambda a, m, p, q: (a, q, m, p)
        perm = (0, 3, 2, 1)
    else:
        in_cs, in_csp = (A, P, Q), (Ap, Pp, Qp)
        out_cs, out_csp = (A, Q, P), (Ap, Qp, Pp)
        in_block, out_block = (at, tp, tq), (at, tq, tp)
        grid = (Ap // at, Pp // tp, Qp // tq)
        in_index = lambda a, p, q: (a, p, q)
        out_index = lambda a, p, q: (a, q, p)
        perm = (0, 2, 1)

    def kernel(x_ref, o_ref):
        o_ref[...] = jnp.transpose(x_ref[...], perm)

    return _pad_call_slice(x, in_cs, in_csp, out_cs, out_csp, in_block, out_block,
                           in_index, out_index, grid, kernel, out_shape)


def _run_keep_t(x, A, P, M, Q, T, out_shape):
    """T >= 128 (already lane-dense), or fallback for small T: swap P and Q with
    the trailing fold T kept as the (tiled) lane axis; pure block transpose."""
    dt = x.dtype
    isz = jnp.dtype(dt).itemsize
    budget = max(8 * 128, _BLOCK_BYTE_BUDGET // isz)
    rf = max(1, _MIN_DMA_RUN_BYTES // isz)
    have_m = M > 1

    tp_min, bq_min = min(P, 8), min(Q, 8)
    bt, Tp = _pick(T, 128, max(128, rf, budget // max(1, tp_min * bq_min)))
    budget_pq = max(64, budget // bt)
    cap_side = max(8, int(math.isqrt(budget_pq)))
    bq, Qp = _pick(Q, 8, cap_side)
    tp, Pp = _pick(P, 8, max(8, budget_pq // max(1, bq)))
    bm, Mp = _pick(M, 1, max(1, budget // (bt * bq * tp))) if have_m else (1, 1)
    at, Ap = _pick(A, 1, max(1, budget // (bt * bq * tp * bm)))

    axes = {"a": [A, Ap, at, 1], "p": [P, Pp, tp, 8], "q": [Q, Qp, bq, 8],
            "t": [T, Tp, bt, 128]}
    if have_m:
        axes["m"] = [M, Mp, bm, 1]
    order = ["a", "m"] + (["q", "p"] if bq >= tp else ["p", "q"]) + ["t"]
    _ensure_two_steps(axes, order, _prod([Ap, Pp, Mp, Qp, Tp]) * isz)
    at, tp, bq, bt = axes["a"][2], axes["p"][2], axes["q"][2], axes["t"][2]
    Ap, Pp, Qp, Tp = axes["a"][1], axes["p"][1], axes["q"][1], axes["t"][1]
    if have_m:
        bm, Mp = axes["m"][2], axes["m"][1]

    if have_m:
        in_cs, in_csp = (A, P, M, Q, T), (Ap, Pp, Mp, Qp, Tp)
        out_cs, out_csp = (A, Q, M, P, T), (Ap, Qp, Mp, Pp, Tp)
        in_block, out_block = (at, tp, bm, bq, bt), (at, bq, bm, tp, bt)
        grid = (Ap // at, Mp // bm, Pp // tp, Qp // bq, Tp // bt)
        in_index = lambda a, m, p, q, t: (a, p, m, q, t)
        out_index = lambda a, m, p, q, t: (a, q, m, p, t)
        perm = (0, 3, 2, 1, 4)
    else:
        in_cs, in_csp = (A, P, Q, T), (Ap, Pp, Qp, Tp)
        out_cs, out_csp = (A, Q, P, T), (Ap, Qp, Pp, Tp)
        in_block, out_block = (at, tp, bq, bt), (at, bq, tp, bt)
        grid = (Ap // at, Pp // tp, Qp // bq, Tp // bt)
        in_index = lambda a, p, q, t: (a, p, q, t)
        out_index = lambda a, p, q, t: (a, q, p, t)
        perm = (0, 2, 1, 3)

    def kernel(x_ref, o_ref):
        o_ref[...] = jnp.transpose(x_ref[...], perm)

    return _pad_call_slice(x, in_cs, in_csp, out_cs, out_csp, in_block, out_block,
                           in_index, out_index, grid, kernel, out_shape)


def _run_fold_t(x, A, P, M, Q, T, out_shape):
    """1 < T < 128: refold so output stores are lane-dense.
    in view (A, P[, M], Q, T), out view (A, Q[, M], P*T).  The kernel permutes
    the (tp, ..., Q, T) block and merges (tp, T) into the output minor dim,
    which is a multiple of 128 -> unmasked vst; HBM runs are >= tile*T elems."""
    dt = x.dtype
    isz = jnp.dtype(dt).itemsize
    budget = max(8 * 128, _BLOCK_BYTE_BUDGET // isz)
    rf = max(1, _MIN_DMA_RUN_BYTES // isz)
    have_m = M > 1

    u_p = 128 // math.gcd(T, 128)          # tp * T becomes the output lane extent
    bm_min = (M if M <= 8 else 8) if have_m else 1
    budget_pq = max(64, budget // (T * bm_min))
    run_floor = -(-rf // T)                # P/Q tile giving a >= 2 KiB HBM run
    cap_side = max(8, run_floor, int(math.isqrt(budget_pq)))
    bq, Qp = _pick(Q, 8, cap_side)
    tp, Pp = _pick(P, u_p, max(u_p, run_floor, budget_pq // max(1, bq)))
    bm, Mp = _pick(M, 8, max(1, budget // (T * tp * bq))) if have_m else (1, 1)
    at, Ap = _pick(A, 1, max(1, budget // (T * tp * bq * bm)))

    axes = {"a": [A, Ap, at, 1], "p": [P, Pp, tp, u_p], "q": [Q, Qp, bq, 8]}
    if have_m:
        axes["m"] = [M, Mp, bm, 8]
    order = ["a", "m"] + (["q", "p"] if bq >= tp else ["p", "q"])
    _ensure_two_steps(axes, order, _prod([Ap, Pp, Mp, Qp, T]) * isz)
    at, tp, bq = axes["a"][2], axes["p"][2], axes["q"][2]
    Ap, Pp, Qp = axes["a"][1], axes["p"][1], axes["q"][1]
    if have_m:
        bm, Mp = axes["m"][2], axes["m"][1]

    if have_m:
        in_cs, in_csp = (A, P, M, Q, T), (Ap, Pp, Mp, Qp, T)
        out_cs, out_csp = (A, Q, M, P * T), (Ap, Qp, Mp, Pp * T)
        in_block, out_block = (at, tp, bm, bq, T), (at, bq, bm, tp * T)
        grid = (Ap // at, Mp // bm, Pp // tp, Qp // bq)
        in_index = lambda a, m, p, q: (a, p, m, q, 0)
        out_index = lambda a, m, p, q: (a, q, m, p)
        perm = (0, 3, 2, 1, 4)
    else:
        in_cs, in_csp = (A, P, Q, T), (Ap, Pp, Qp, T)
        out_cs, out_csp = (A, Q, P * T), (Ap, Qp, Pp * T)
        in_block, out_block = (at, tp, bq, T), (at, bq, tp * T)
        grid = (Ap // at, Pp // tp, Qp // bq)
        in_index = lambda a, p, q: (a, p, q, 0)
        out_index = lambda a, p, q: (a, q, p)
        perm = (0, 2, 1, 3)

    def kernel(x_ref, o_ref):
        y = jnp.transpose(x_ref[...], perm)       # (..., bq[, bm], tp, T)
        o_ref[...] = y.reshape(o_ref.shape)       # merge (tp, T) -> lane-dense minor

    return _pad_call_slice(x, in_cs, in_csp, out_cs, out_csp, in_block, out_block,
                           in_index, out_index, grid, kernel, out_shape)


def trans_forward(x, dim1, dim2):
    """JAX/Pallas equivalent of trans(dim1, dim2).forward(x) == x.transpose(dim1, dim2)."""
    nd = x.ndim
    d1, d2 = dim1 % nd, dim2 % nd
    if d1 == d2:
        return x
    if d1 > d2:
        d1, d2 = d2, d1

    S = tuple(int(s) for s in x.shape)
    out_shape = list(S)
    out_shape[d1], out_shape[d2] = out_shape[d2], out_shape[d1]
    out_shape = tuple(out_shape)

    if _prod(S) == 0:
        return jnp.zeros(out_shape, x.dtype)

    A = _prod(S[:d1])          # leading untouched dims (batch fold)
    P = S[d1]
    M = _prod(S[d1 + 1:d2])    # untouched dims between the swapped pair
    Q = S[d2]
    T = _prod(S[d2 + 1:])      # trailing untouched dims (lane fold)

    # Swaps that are layout-preserving (a size-1 dim moves past nothing real).
    if (P == 1 and Q == 1) or (M == 1 and (P == 1 or Q == 1)):
        return x.reshape(out_shape)

    if T == 1:
        return _run_minor_swap(x, A, P, M, Q, out_shape)
    if T < 128:
        try:
            return _run_fold_t(x, A, P, M, Q, T, out_shape)
        except Exception:
            # TODO(synk): lane-dense refold kernel did not lower on this backend;
            # fall back to the plain (masked-store) block-transpose kernel.
            return _run_keep_t(x, A, P, M, Q, T, out_shape)
    return _run_keep_t(x, A, P, M, Q, T, out_shape)


if __name__ == "__main__":
    key = jax.random.PRNGKey(0)

    # Small NCHW input consistent with typical use of `trans` in ncmnet_plus.
    x = jax.random.normal(key, (2, 4, 16, 16), dtype=jnp.float32)

    cases = [
        (x, 1, 2),   # channel <-> height (T=16 < 128: lane-dense refold path)
        (x, 2, 3),   # height  <-> width  (T=1: minor-axis transpose path)
        (x, 0, 1),   # batch   <-> channel (T=256 >= 128: pure-transpose path)
    ]
    # Moderately sized inputs to exercise tiling / multi-step grids.
    xb = jax.random.normal(key, (4, 8, 256, 128), dtype=jnp.float32)   # 4 MiB
    cases.append((xb, 1, 2))
    xc = jax.random.normal(key, (2, 4, 256, 256), dtype=jnp.float32)   # 2 MiB
    cases.append((xc, 2, 3))
    # bf16 minor-axis transpose (dtype coverage on a well-supported path).
    xd = x.astype(jnp.bfloat16)
    cases.append((xd, 2, 3))

    for inp, d1, d2 in cases:
        out = jax.block_until_ready(trans_forward(inp, d1, d2))
        ref = jnp.swapaxes(inp, d1, d2)
        assert out.shape == ref.shape, (d1, d2, out.shape, ref.shape)
        assert jnp.array_equal(out, ref), f"mismatch for trans({d1}, {d2})"

    print("KERNEL_OK")
</pallas_src>

<mosaic_0001>
module attributes {stable_mosaic.version = 11 : i64} {
  func.func @kernel(%arg0: i32, %arg1: i32, %arg2: i32, %arg3: memref<2x4x16x16xf32, #tpu.memory_space<vmem>>, %arg4: memref<2x16x64xf32, #tpu.memory_space<vmem>>) attributes {dimension_semantics = [#tpu.dimension_semantics<parallel>, #tpu.dimension_semantics<parallel>, #tpu.dimension_semantics<parallel>], iteration_bounds = array<i64: 1, 1, 1>, scalar_prefetch = 0 : i64, scratch_operands = 0 : i64, tpu.core_type = #tpu.core_type<tc>, window_params = [{transform_indices = @transform_0, window_bounds = array<i64: 2, 4, 16, 16>}, {transform_indices = @transform_1, window_bounds = array<i64: 2, 16, 64>}]} {
    %c0 = arith.constant 0 : index
    %c0_0 = arith.constant 0 : index
    %c0_1 = arith.constant 0 : index
    %c0_2 = arith.constant 0 : index
    %0 = vector.load %arg3[%c0, %c0_0, %c0_1, %c0_2] : memref<2x4x16x16xf32, #tpu.memory_space<vmem>>, vector<2x4x16x16xf32>
    %1 = tpu.transpose %0, [0, 2, 1, 3] : vector<2x4x16x16xf32> -> vector<2x16x4x16xf32>
    %2 = vector.shape_cast %1 : vector<2x16x4x16xf32> to vector<2x16x64xf32>
    %c0_3 = arith.constant 0 : index
    %c0_4 = arith.constant 0 : index
    %c0_5 = arith.constant 0 : index
    %3 = vector.load %arg4[%c0_3, %c0_4, %c0_5] : memref<2x16x64xf32, #tpu.memory_space<vmem>>, vector<2x16x64xf32>
    tpu.vector_store %arg4[%c0_3, %c0_4, %c0_5], %2 {strides = array<i32>} : memref<2x16x64xf32, #tpu.memory_space<vmem>>, vector<2x16x64xf32>,
    return
  }
  func.func @transform_0(%arg0: i32, %arg1: i32, %arg2: i32) -> (i32, i32, i32, i32) {
    %c0_i32 = arith.constant 0 : i32
    %c0_i32_0 = arith.constant 0 : i32
    return %arg0, %arg1, %arg2, %c0_i32 : i32, i32, i32, i32
  }
  func.func @transform_1(%arg0: i32, %arg1: i32, %arg2: i32) -> (i32, i32, i32) {
    %c0_i32 = arith.constant 0 : i32
    return %arg0, %arg2, %arg1 : i32, i32, i32
  }
}

module attributes {stable_mosaic.version = 11 : i64} {
  func.func @kernel(%arg0: i32, %arg1: i32, %arg2: i32, %arg3: i32, %arg4: memref<2x4x16x16xf32, #tpu.memory_space<vmem>>, %arg5: memref<2x16x4x16xf32, #tpu.memory_space<vmem>>) attributes {dimension_semantics = [#tpu.dimension_semantics<parallel>, #tpu.dimension_semantics<parallel>, #tpu.dimension_semantics<parallel>, #tpu.dimension_semantics<parallel>], iteration_bounds = array<i64: 1, 1, 1, 1>, scalar_prefetch = 0 : i64, scratch_operands = 0 : i64, tpu.core_type = #tpu.core_type<tc>, window_params = [{transform_indices = @transform_0, window_bounds = array<i64: 2, 4, 16, 16>}, {transform_indices = @transform_1, window_bounds = array<i64: 2, 16, 4, 16>}]} {
    %c0 = arith.constant 0 : index
    %c0_0 = arith.constant 0 : index
    %c0_1 = arith.constant 0 : index
    %c0_2 = arith.constant 0 : index
    %0 = vector.load %arg4[%c0, %c0_0, %c0_1, %c0_2] : memref<2x4x16x16xf32, #tpu.memory_space<vmem>>, vector<2x4x16x16xf32>
    %1 = tpu.transpose %0, [0, 2, 1, 3] : vector<2x4x16x16xf32> -> vector<2x16x4x16xf32>
    %c0_3 = arith.constant 0 : index
    %c0_4 = arith.constant 0 : index
    %c0_5 = arith.constant 0 : index
    %c0_6 = arith.constant 0 : index
    %2 = vector.load %arg5[%c0_3, %c0_4, %c0_5, %c0_6] : memref<2x16x4x16xf32, #tpu.memory_space<vmem>>, vector<2x16x4x16xf32>
    tpu.vector_store %arg5[%c0_3, %c0_4, %c0_5, %c0_6], %1 {strides = array<i32>} : memref<2x16x4x16xf32, #tpu.memory_space<vmem>>, vector<2x16x4x16xf32>,
    return
  }
  func.func @transform_0(%arg0: i32, %arg1: i32, %arg2: i32, %arg3: i32) -> (i32, i32, i32, i32) {
    %c0_i32 = arith.constant 0 : i32
    return %arg0, %arg1, %arg2, %arg3 : i32, i32, i32, i32
  }
  func.func @transform_1(%arg0: i32, %arg1: i32, %arg2: i32, %arg3: i32) -> (i32, i32, i32, i32) {
    %c0_i32 = arith.constant 0 : i32
    return %arg0, %arg2, %arg1, %arg3 : i32, i32, i32, i32
  }
}

</mosaic_0001>

<llo_original>
// kernel: tpu_custom_call.1
$region0: #{tpu_custom_call.1}
  #allocation0 [shape = 'u32[]', space=smem, size = 0x4, offset = 0x4, fixed_abs, tag = 'smem constant byte address 0x4 - core index']
  #allocation1 [shape = 'u32[72,128]{1,0:T(1,128)}', space=vmem, size = 0x9000, scoped, tag = 'internal scratch']
  %s0 = inlined_call_operand.hbm [shape: f32[2,4,16,16], index: 0, kind: input, shape index: {}]
  %s1 = inlined_call_operand.hbm [shape: f32[2,16,64], index: 1, kind: output, shape index: {}]
  %s2 = sld [smem:[#allocation0]]
  $region18: #{tpu_custom_call.1} parent=0
    _
  %s4 = ssub.s32 1, %s2
  %s5 = scalar_select 0, %s4, %s2
  $region1: #{tpu_custom_call.1} parent=0
    #allocation2 [shape = 'u8[65536]{0}', space=vmem, size = 0x10000, scoped, tag = 'input window, operand 0, single buffered']
    #allocation3 [shape = 's32[1]{0}', space=sflag, size = 0x4, scoped, tag = 'scoped memory for tpu_custom_call.1']
    #allocation4 [shape = 's32[1]{0}', space=sflag, size = 0x4, scoped, tag = 'scoped memory for tpu_custom_call.1']
    #allocation5 [shape = 'u8[16384]{0}', space=vmem, size = 0x4000, scoped, tag = 'output window, operand 0, single buffered']
    %6 = vsyncpa [#allocation3], 0
    %7 = vsyncpa [#allocation4], 0
    // Predicated region
    $region2: #{tpu_custom_call.1} parent=1 // pred_check
      _
    $region3: #{tpu_custom_call.1} parent=1 // pred_check_branch
      %9 = sbr.rel (0) target = $region5
    $region4: #{tpu_custom_call.1} parent=1 // pred_region
      %11 = vsyncadd [#allocation3], 0
      %s12 = sshll.u32 %s0, 4
      %s13 = int_to_ptr.hbm [resolvable:$true] %s12
      %s14 = sshll.u32 [#allocation2], 4
      %s15 = int_to_ptr.vmem [resolvable:$true] %s14
      %20 = dma.hbm_to_vmem [thread:$0]  %s13, 2048, %s15, [#allocation3], 128, 128, 8
    $region5: #{tpu_custom_call.1} parent=1 // pred_fallthru
      _
    // Predicated region
    $region6: #{tpu_custom_call.1} parent=1 // pred_check
      _
    $region7: #{tpu_custom_call.1} parent=1 // pred_check_branch
      %22 = sbr.rel (0) target = $region9
    $region8: #{tpu_custom_call.1} parent=1 // pred_region
      %24 = dma.done [#allocation3], 2048
    $region9: #{tpu_custom_call.1} parent=1 // pred_fallthru
      _
    %v25 = vld [vmem:[#allocation2] sm:$0xff]
    %v26 = vld [vmem:[#allocation2 + $0x8] sm:$0xff]
    %v27 = vld [vmem:[#allocation2 + $0x10] sm:$0xff]
    %v28 = vld [vmem:[#allocation2 + $0x18] sm:$0xff]
    %v29 = vld [vmem:[#allocation2 + $0x20] sm:$0xff]
    %v30 = vld [vmem:[#allocation2 + $0x28] sm:$0xff]
    %v31 = vld [vmem:[#allocation2 + $0x30] sm:$0xff]
    %v32 = vld [vmem:[#allocation2 + $0x38] sm:$0xff]
    %v33 = vld [vmem:[#allocation2 + $0x40] sm:$0xff]
    %v34 = vld [vmem:[#allocation2 + $0x48] sm:$0xff]
    %v35 = vld [vmem:[#allocation2 + $0x50] sm:$0xff]
    %v36 = vld [vmem:[#allocation2 + $0x58] sm:$0xff]
    %v37 = vld [vmem:[#allocation2 + $0x60] sm:$0xff]
    %v38 = vld [vmem:[#allocation2 + $0x68] sm:$0xff]
    %v39 = vld [vmem:[#allocation2 + $0x70] sm:$0xff]
    %v40 = vld [vmem:[#allocation2 + $0x78] sm:$0xff]
    %v41 = vrot.slane %v29, 4
    %vm42 = vcmask 1047556
    %v43 = vsel %vm42, %v41, %v25
    %v44 = vrot.slane %v25, 4
    %v45 = vsel %vm42, %v29, %v44
    %v47 = vunpack.c.l.s4 1983009808
    %v48 = vunpack.c.0.s8 %v47
    %v49 = vperm.slane %v43, %v48
    %v51 = vunpack.c.l.s4 1983009808
    %v52 = vunpack.c.0.s8 %v51
    %v53 = vperm.slane %v45, %v52
    %v54 = vrot.slane %v31, 4
    %v55 = vsel %vm42, %v54, %v27
    %v56 = vrot.slane %v27, 4
    %v57 = vsel %vm42, %v31, %v56
    %v59 = vunpack.c.l.s4 1983009808
    %v60 = vunpack.c.0.s8 %v59
    %v61 = vperm.slane %v55, %v60
    %v63 = vunpack.c.l.s4 1983009808
    %v64 = vunpack.c.0.s8 %v63
    %v65 = vperm.slane %v57, %v64
    %v66 = vrot.slane %v61, 4
    %v67 = vsel %vm42, %v66, %v49
    %v68 = vrot.slane %v49, 4
    %v69 = vsel %vm42, %v61, %v68
    %v71 = vunpack.c.l.s4 1934713408
    %v72 = vunpack.c.0.s8 %v71
    %v73 = vperm.slane %v67, %v72
    %v75 = vunpack.c.l.s4 1934713408
    %v76 = vunpack.c.0.s8 %v75
    %v77 = vperm.slane %v69, %v76
    %v78 = vrot.slane %v65, 4
    %v79 = vsel %vm42, %v78, %v53
    %v80 = vrot.slane %v53, 4
    %v81 = vsel %vm42, %v65, %v80
    %v83 = vunpack.c.l.s4 1934713408
    %v84 = vunpack.c.0.s8 %v83
    %v85 = vperm.slane %v79, %v84
    %v87 = vunpack.c.l.s4 1934713408
    %v88 = vunpack.c.0.s8 %v87
    %v89 = vperm.slane %v81, %v88
    %v90 = vrot.slane %v73, 4
    %v91 = vsel %vm42, 0.0, %v90
    %v92 = vrot.slane %v77, 4
    %v93 = vsel %vm42, 0.0, %v92
    %v94 = vrot.slane %v85, 4
    %v95 = vsel %vm42, 0.0, %v94
    %v96 = vrot.slane %v89, 4
    %v97 = vsel %vm42, 0.0, %v96
    %v98 = vrot.slane %v30, 4
    %v99 = vsel %vm42, %v98, %v26
    %v100 = vrot.slane %v26, 4
    %v101 = vsel %vm42, %v30, %v100
    %v103 = vunpack.c.l.s4 1983009808
    %v104 = vunpack.c.0.s8 %v103
    %v105 = vperm.slane %v99, %v104
    %v107 = vunpack.c.l.s4 1983009808
    %v108 = vunpack.c.0.s8 %v107
    %v109 = vperm.slane %v101, %v108
    %v110 = vrot.slane %v32, 4
    %v111 = vsel %vm42, %v110, %v28
    %v112 = vrot.slane %v28, 4
    %v113 = vsel %vm42, %v32, %v112
    %v115 = vunpack.c.l.s4 1983009808
    %v116 = vunpack.c.0.s8 %v115
    %v117 = vperm.slane %v111, %v116
    %v119 = vunpack.c.l.s4 1983009808
    %v120 = vunpack.c.0.s8 %v119
    %v121 = vperm.slane %v113, %v120
    %v122 = vrot.slane %v117, 4
    %v123 = vsel %vm42, %v122, %v105
    %v124 = vrot.slane %v105, 4
    %v125 = vsel %vm42, %v117, %v124
    %v127 = vunpack.c.l.s4 1934713408
    %v128 = vunpack.c.0.s8 %v127
    %v129 = vperm.slane %v123, %v128
    %v131 = vunpack.c.l.s4 1934713408
    %v132 = vunpack.c.0.s8 %v131
    %v133 = vperm.slane %v125, %v132
    %v134 = vrot.slane %v121, 4
    %v135 = vsel %vm42, %v134, %v109
    %v136 = vrot.slane %v109, 4
    %v137 = vsel %vm42, %v121, %v136
    %v139 = vunpack.c.l.s4 1934713408
    %v140 = vunpack.c.0.s8 %v139
    %v141 = vperm.slane %v135, %v140
    %v143 = vunpack.c.l.s4 1934713408
    %v144 = vunpack.c.0.s8 %v143
    %v145 = vperm.slane %v137, %v144
    %v146 = vrot.slane %v129, 4
    %v147 = vsel %vm42, 0.0, %v146
    %v148 = vrot.slane %v133, 4
    %v149 = vsel %vm42, 0.0, %v148
    %v150 = vrot.slane %v141, 4
    %v151 = vsel %vm42, 0.0, %v150
    %v152 = vrot.slane %v145, 4
    %v153 = vsel %vm42, 0.0, %v152
    %v154 = vrot.slane %v37, 4
    %v155 = vsel %vm42, %v154, %v33
    %v156 = vrot.slane %v33, 4
    %v157 = vsel %vm42, %v37, %v156
    %v159 = vunpack.c.l.s4 1983009808
    %v160 = vunpack.c.0.s8 %v159
    %v161 = vperm.slane %v155, %v160
    %v163 = vunpack.c.l.s4 1983009808
    %v164 = vunpack.c.0.s8 %v163
    %v165 = vperm.slane %v157, %v164
    %v166 = vrot.slane %v39, 4
    %v167 = vsel %vm42, %v166, %v35
    %v168 = vrot.slane %v35, 4
    %v169 = vsel %vm42, %v39, %v168
    %v171 = vunpack.c.l.s4 1983009808
    %v172 = vunpack.c.0.s8 %v171
    %v173 = vperm.slane %v167, %v172
    %v175 = vunpack.c.l.s4 1983009808
    %v176 = vunpack.c.0.s8 %v175
    %v177 = vperm.slane %v169, %v176
    %v178 = vrot.slane %v173, 4
    %v179 = vsel %vm42, %v178, %v161
    %v180 = vrot.slane %v161, 4
    %v181 = vsel %vm42, %v173, %v180
    %v183 = vunpack.c.l.s4 1934713408
    %v184 = vunpack.c.0.s8 %v183
    %v185 = vperm.slane %v179, %v184
    %v187 = vunpack.c.l.s4 1934713408
    %v188 = vunpack.c.0.s8 %v187
    %v189 = vperm.slane %v181, %v188
    %v190 = vrot.slane %v177, 4
    %v191 = vsel %vm42, %v190, %v165
    %v192 = vrot.slane %v165, 4
    %v193 = vsel %vm42, %v177, %v192
    %v195 = vunpack.c.l.s4 1934713408
    %v196 = vunpack.c.0.s8 %v195
    %v197 = vperm.slane %v191, %v196
    %v199 = vunpack.c.l.s4 1934713408
    %v200 = vunpack.c.0.s8 %v199
    %v201 = vperm.slane %v193, %v200
    %v202 = vrot.slane %v185, 4
    %v203 = vsel %vm42, 0.0, %v202
    %v204 = vrot.slane %v189, 4
    %v205 = vsel %vm42, 0.0, %v204
    %v206 = vrot.slane %v197, 4
    %v207 = vsel %vm42, 0.0, %v206
    %v208 = vrot.slane %v201, 4
    %v209 = vsel %vm42, 0.0, %v208
    %v210 = vrot.slane %v38, 4
    %v211 = vsel %vm42, %v210, %v34
    %v212 = vrot.slane %v34, 4
    %v213 = vsel %vm42, %v38, %v212
    %v215 = vunpack.c.l.s4 1983009808
    %v216 = vunpack.c.0.s8 %v215
    %v217 = vperm.slane %v211, %v216
    %v219 = vunpack.c.l.s4 1983009808
    %v220 = vunpack.c.0.s8 %v219
    %v221 = vperm.slane %v213, %v220
    %v222 = vrot.slane %v40, 4
    %v223 = vsel %vm42, %v222, %v36
    %v224 = vrot.slane %v36, 4
    %v225 = vsel %vm42, %v40, %v224
    %v227 = vunpack.c.l.s4 1983009808
    %v228 = vunpack.c.0.s8 %v227
    %v229 = vperm.slane %v223, %v228
    %v231 = vunpack.c.l.s4 1983009808
    %v232 = vunpack.c.0.s8 %v231
    %v233 = vperm.slane %v225, %v232
    %v234 = vrot.slane %v229, 4
    %v235 = vsel %vm42, %v234, %v217
    %v236 = vrot.slane %v217, 4
    %v237 = vsel %vm42, %v229, %v236
    %v239 = vunpack.c.l.s4 1934713408
    %v240 = vunpack.c.0.s8 %v239
    %v241 = vperm.slane %v235, %v240
    %v243 = vunpack.c.l.s4 1934713408
    %v244 = vunpack.c.0.s8 %v243
    %v245 = vperm.slane %v237, %v244
    %v246 = vrot.slane %v233, 4
    %v247 = vsel %vm42, %v246, %v221
    %v248 = vrot.slane %v221, 4
    %v249 = vsel %vm42, %v233, %v248
    %v251 = vunpack.c.l.s4 1934713408
    %v252 = vunpack.c.0.s8 %v251
    %v253 = vperm.slane %v247, %v252
    %v255 = vunpack.c.l.s4 1934713408
    %v256 = vunpack.c.0.s8 %v255
    %v257 = vperm.slane %v249, %v256
    %v258 = vrot.slane %v241, 4
    %v259 = vsel %vm42, 0.0, %v258
    %v260 = vrot.slane %v245, 4
    %v261 = vsel %vm42, 0.0, %v260
    %v262 = vrot.slane %v253, 4
    %v263 = vsel %vm42, 0.0, %v262
    %v264 = vrot.slane %v257, 4
    %v265 = vsel %vm42, 0.0, %v264
    %v266 = vsel %vm42, %v92, %v73
    %v268 = vunpack.c.l.s4 1983009808
    %v269 = vunpack.c.0.s8 %v268
    %v270 = vperm.slane %v266, %v269
    %v271 = vrot.slane %v93, 4
    %v272 = vsel %vm42, %v271, %v91
    %v274 = vunpack.c.l.s4 1983009808
    %v275 = vunpack.c.0.s8 %v274
    %v276 = vperm.slane %v272, %v275
    %v277 = vsel %vm42, %v96, %v85
    %v279 = vunpack.c.l.s4 1983009808
    %v280 = vunpack.c.0.s8 %v279
    %v281 = vperm.slane %v277, %v280
    %v282 = vrot.slane %v97, 4
    %v283 = vsel %vm42, %v282, %v95
    %v285 = vunpack.c.l.s4 1983009808
    %v286 = vunpack.c.0.s8 %v285
    %v287 = vperm.slane %v283, %v286
    %v288 = vrot.slane %v276, 4
    %v289 = vsel %vm42, %v288, %v270
    %v290 = vrot.slane %v270, 4
    %v291 = vsel %vm42, %v276, %v290
    %v293 = vunpack.c.l.s4 1934713408
    %v294 = vunpack.c.0.s8 %v293
    %v295 = vperm.slane %v289, %v294
    %v297 = vunpack.c.l.s4 1934713408
    %v298 = vunpack.c.0.s8 %v297
    %v299 = vperm.slane %v291, %v298
    %v300 = vrot.slane %v287, 4
    %v301 = vsel %vm42, %v300, %v281
    %v302 = vrot.slane %v281, 4
    %v303 = vsel %vm42, %v287, %v302
    %v305 = vunpack.c.l.s4 1934713408
    %v306 = vunpack.c.0.s8 %v305
    %v307 = vperm.slane %v301, %v306
    %v309 = vunpack.c.l.s4 1934713408
    %v310 = vunpack.c.0.s8 %v309
    %v311 = vperm.slane %v303, %v310
    %v312 = vrot.slane %v307, 4
    %v313 = vsel %vm42, %v312, %v295
    %v314 = vrot.slane %v295, 4
    %v315 = vsel %vm42, %v307, %v314
    %v316 = vrot.slane %v311, 4
    %v317 = vsel %vm42, %v316, %v299
    %v318 = vrot.slane %v299, 4
    %v319 = vsel %vm42, %v311, %v318
    %v320 = vsel %vm42, %v148, %v129
    %v322 = vunpack.c.l.s4 1983009808
    %v323 = vunpack.c.0.s8 %v322
    %v324 = vperm.slane %v320, %v323
    %v325 = vrot.slane %v149, 4
    %v326 = vsel %vm42, %v325, %v147
    %v328 = vunpack.c.l.s4 1983009808
    %v329 = vunpack.c.0.s8 %v328
    %v330 = vperm.slane %v326, %v329
    %v331 = vsel %vm42, %v152, %v141
    %v333 = vunpack.c.l.s4 1983009808
    %v334 = vunpack.c.0.s8 %v333
    %v335 = vperm.slane %v331, %v334
    %v336 = vrot.slane %v153, 4
    %v337 = vsel %vm42, %v336, %v151
    %v339 = vunpack.c.l.s4 1983009808
    %v340 = vunpack.c.0.s8 %v339
    %v341 = vperm.slane %v337, %v340
    %v342 = vrot.slane %v330, 4
    %v343 = vsel %vm42, %v342, %v324
    %v344 = vrot.slane %v324, 4
    %v345 = vsel %vm42, %v330, %v344
    %v347 = vunpack.c.l.s4 1934713408
    %v348 = vunpack.c.0.s8 %v347
    %v349 = vperm.slane %v343, %v348
    %v351 = vunpack.c.l.s4 1934713408
    %v352 = vunpack.c.0.s8 %v351
    %v353 = vperm.slane %v345, %v352
    %v354 = vrot.slane %v341, 4
    %v355 = vsel %vm42, %v354, %v335
    %v356 = vrot.slane %v335, 4
    %v357 = vsel %vm42, %v341, %v356
    %v359 = vunpack.c.l.s4 1934713408
    %v360 = vunpack.c.0.s8 %v359
    %v361 = vperm.slane %v355, %v360
    %v363 = vunpack.c.l.s4 1934713408
    %v364 = vunpack.c.0.s8 %v363
    %v365 = vperm.slane %v357, %v364
    %v366 = vrot.slane %v361, 4
    %v367 = vsel %vm42, %v366, %v349
    %v368 = vrot.slane %v349, 4
    %v369 = vsel %vm42, %v361, %v368
    %v370 = vrot.slane %v365, 4
    %v371 = vsel %vm42, %v370, %v353
    %v372 = vrot.slane %v353, 4
    %v373 = vsel %vm42, %v365, %v372
    %v374 = vsel %vm42, %v204, %v185
    %v376 = vunpack.c.l.s4 1983009808
    %v377 = vunpack.c.0.s8 %v376
    %v378 = vperm.slane %v374, %v377
    %v379 = vrot.slane %v205, 4
    %v380 = vsel %vm42, %v379, %v203
    %v382 = vunpack.c.l.s4 1983009808
    %v383 = vunpack.c.0.s8 %v382
    %v384 = vperm.slane %v380, %v383
    %v385 = vsel %vm42, %v208, %v197
    %v387 = vunpack.c.l.s4 1983009808
    %v388 = vunpack.c.0.s8 %v387
    %v389 = vperm.slane %v385, %v388
    %v390 = vrot.slane %v209, 4
    %v391 = vsel %vm42, %v390, %v207
    %v393 = vunpack.c.l.s4 1983009808
    %v394 = vunpack.c.0.s8 %v393
    %v395 = vperm.slane %v391, %v394
    %v396 = vrot.slane %v384, 4
    %v397 = vsel %vm42, %v396, %v378
    %v398 = vrot.slane %v378, 4
    %v399 = vsel %vm42, %v384, %v398
    %v401 = vunpack.c.l.s4 1934713408
    %v402 = vunpack.c.0.s8 %v401
    %v403 = vperm.slane %v397, %v402
    %v405 = vunpack.c.l.s4 1934713408
    %v406 = vunpack.c.0.s8 %v405
    %v407 = vperm.slane %v399, %v406
    %v408 = vrot.slane %v395, 4
    %v409 = vsel %vm42, %v408, %v389
    %v410 = vrot.slane %v389, 4
    %v411 = vsel %vm42, %v395, %v410
    %v413 = vunpack.c.l.s4 1934713408
    %v414 = vunpack.c.0.s8 %v413
    %v415 = vperm.slane %v409, %v414
    %v417 = vunpack.c.l.s4 1934713408
    %v418 = vunpack.c.0.s8 %v417
    %v419 = vperm.slane %v411, %v418
    %v420 = vrot.slane %v415, 4
    %v421 = vsel %vm42, %v420, %v403
    %v422 = vrot.slane %v403, 4
    %v423 = vsel %vm42, %v415, %v422
    %v424 = vrot.slane %v419, 4
    %v425 = vsel %vm42, %v424, %v407
    %v426 = vrot.slane %v407, 4
    %v427 = vsel %vm42, %v419, %v426
    %v428 = vsel %vm42, %v260, %v241
    %v430 = vunpack.c.l.s4 1983009808
    %v431 = vunpack.c.0.s8 %v430
    %v432 = vperm.slane %v428, %v431
    %v433 = vrot.slane %v261, 4
    %v434 = vsel %vm42, %v433, %v259
    %v436 = vunpack.c.l.s4 1983009808
    %v437 = vunpack.c.0.s8 %v436
    %v438 = vperm.slane %v434, %v437
    %v439 = vsel %vm42, %v264, %v253
    %v441 = vunpack.c.l.s4 1983009808
    %v442 = vunpack.c.0.s8 %v441
    %v443 = vperm.slane %v439, %v442
    %v444 = vrot.slane %v265, 4
    %v445 = vsel %vm42, %v444, %v263
    %v447 = vunpack.c.l.s4 1983009808
    %v448 = vunpack.c.0.s8 %v447
    %v449 = vperm.slane %v445, %v448
    %v450 = vrot.slane %v438, 4
    %v451 = vsel %vm42, %v450, %v432
    %v452 = vrot.slane %v432, 4
    %v453 = vsel %vm42, %v438, %v452
    %v455 = vunpack.c.l.s4 1934713408
    %v456 = vunpack.c.0.s8 %v455
    %v457 = vperm.slane %v451, %v456
    %v459 = vunpack.c.l.s4 1934713408
    %v460 = vunpack.c.0.s8 %v459
    %v461 = vperm.slane %v453, %v460
    %v462 = vrot.slane %v449, 4
    %v463 = vsel %vm42, %v462, %v443
    %v464 = vrot.slane %v443, 4
    %v465 = vsel %vm42, %v449, %v464
    %v467 = vunpack.c.l.s4 1934713408
    %v468 = vunpack.c.0.s8 %v467
    %v469 = vperm.slane %v463, %v468
    %v471 = vunpack.c.l.s4 1934713408
    %v472 = vunpack.c.0.s8 %v471
    %v473 = vperm.slane %v465, %v472
    %v474 = vrot.slane %v469, 4
    %v475 = vsel %vm42, %v474, %v457
    %v476 = vrot.slane %v457, 4
    %v477 = vsel %vm42, %v469, %v476
    %v478 = vrot.slane %v473, 4
    %v479 = vsel %vm42, %v478, %v461
    %v480 = vrot.slane %v461, 4
    %v481 = vsel %vm42, %v473, %v480
    %486 = vrot.lane.b32.xlu0 %v315, 16
    %v487 = vpop.permute.xlu0 %486
    %488 = vrot.lane.b32.xlu0 %v369, 16
    %v489 = vpop.permute.xlu0 %488
    %490 = vrot.lane.b32.xlu0 %v423, 16
    %v491 = vpop.permute.xlu0 %490
    %492 = vrot.lane.b32.xlu0 %v477, 16
    %v493 = vpop.permute.xlu0 %492
    %502 = vrot.lane.b32.xlu0 %v317, 32
    %v503 = vpop.permute.xlu0 %502
    %504 = vrot.lane.b32.xlu0 %v371, 32
    %v505 = vpop.permute.xlu0 %504
    %506 = vrot.lane.b32.xlu0 %v425, 32
    %v507 = vpop.permute.xlu0 %506
    %508 = vrot.lane.b32.xlu0 %v479, 32
    %v509 = vpop.permute.xlu0 %508
    %518 = vrot.lane.b32.xlu0 %v319, 48
    %v519 = vpop.permute.xlu0 %518
    %520 = vrot.lane.b32.xlu0 %v373, 48
    %v521 = vpop.permute.xlu0 %520
    %522 = vrot.lane.b32.xlu0 %v427, 48
    %v523 = vpop.permute.xlu0 %522
    %524 = vrot.lane.b32.xlu0 %v481, 48
    %v525 = vpop.permute.xlu0 %524
    %vm530 = vcmask 130048
    %v531 = vsel %vm530, %v313, %v487
    %v532 = vsel %vm530, %v367, %v489
    %v533 = vsel %vm530, %v421, %v491
    %v534 = vsel %vm530, %v475, %v493
    %vm535 = vcmask 261120
    %v536 = vsel %vm535, %v531, %v503
    %v537 = vsel %vm535, %v532, %v505
    %v538 = vsel %vm535, %v533, %v507
    %v539 = vsel %vm535, %v534, %v509
    %vm540 = vcmask 392192
    %v541 = vsel %vm540, %v536, %v519
    %v542 = vsel %vm540, %v537, %v521
    %v543 = vsel %vm540, %v538, %v523
    %v544 = vsel %vm540, %v539, %v525
    %vm545 = vcmask 523264
    %546 = vst.msk [vmem:[#allocation5] sm:$0xff] %vm545, %v541
    %547 = vst.msk [vmem:[#allocation5 + $0x8] sm:$0xff] %vm545, %v542
    %548 = vst.msk [vmem:[#allocation5 + $0x10] sm:$0xff] %vm545, %v543
    %549 = vst.msk [vmem:[#allocation5 + $0x18] sm:$0xff] %vm545, %v544
    // Predicated region
    $region10: #{tpu_custom_call.1} parent=1 // pred_check
      _
    $region11: #{tpu_custom_call.1} parent=1 // pred_check_branch
      %551 = sbr.rel (0) target = $region13
    $region12: #{tpu_custom_call.1} parent=1 // pred_region
      %553 = vsyncadd [#allocation4], 0
      %s554 = sshll.u32 [#allocation5], 4
      %s555 = int_to_ptr.vmem [resolvable:$true] %s554
      %s556 = sshll.u32 %s1, 4
      %s557 = int_to_ptr.hbm [resolvable:$true] %s556
      %562 = dma.vmem_to_hbm [thread:$0]  %s555, 512, %s557, [#allocation4], 128, 128, 8
    $region13: #{tpu_custom_call.1} parent=1 // pred_fallthru
      _
    // Predicated region
    $region14: #{tpu_custom_call.1} parent=1 // pred_check
      _
    $region15: #{tpu_custom_call.1} parent=1 // pred_check_branch
      %564 = sbr.rel (0) target = $region17
    $region16: #{tpu_custom_call.1} parent=1 // pred_region
      %566 = dma.done [#allocation4], 512
    $region17: #{tpu_custom_call.1} parent=1 // pred_fallthru
      _
    %567 = vsyncpa [#allocation3], 1
    %568 = vsyncpa [#allocation4], 1

// kernel: tpu_custom_call.1
$region0: #{tpu_custom_call.1}
  #allocation0 [shape = 'u32[]', space=smem, size = 0x4, offset = 0x4, fixed_abs, tag = 'smem constant byte address 0x4 - core index']
  #allocation1 [shape = 'u32[72,128]{1,0:T(1,128)}', space=vmem, size = 0x9000, scoped, tag = 'internal scratch']
  %s0 = inlined_call_operand.hbm [shape: f32[2,4,16,16], index: 0, kind: input, shape index: {}]
  %s1 = inlined_call_operand.hbm [shape: f32[2,16,4,16], index: 1, kind: output, shape index: {}]
  %s2 = sld [smem:[#allocation0]]
  $region18: #{tpu_custom_call.1} parent=0
    _
  %s4 = ssub.s32 1, %s2
  %s5 = scalar_select 0, %s4, %s2
  $region1: #{tpu_custom_call.1} parent=0
    #allocation2 [shape = 'u8[65536]{0}', space=vmem, size = 0x10000, scoped, tag = 'input window, operand 0, single buffered']
    #allocation3 [shape = 's32[1]{0}', space=sflag, size = 0x4, scoped, tag = 'scoped memory for tpu_custom_call.1']
    #allocation4 [shape = 's32[1]{0}', space=sflag, size = 0x4, scoped, tag = 'scoped memory for tpu_custom_call.1']
    #allocation5 [shape = 'u8[65536]{0}', space=vmem, size = 0x10000, scoped, tag = 'output window, operand 0, single buffered']
    %6 = vsyncpa [#allocation3], 0
    %7 = vsyncpa [#allocation4], 0
    // Predicated region
    $region2: #{tpu_custom_call.1} parent=1 // pred_check
      _
    $region3: #{tpu_custom_call.1} parent=1 // pred_check_branch
      %9 = sbr.rel (0) target = $region5
    $region4: #{tpu_custom_call.1} parent=1 // pred_region
      %11 = vsyncadd [#allocation3], 0
      %s12 = sshll.u32 %s0, 4
      %s13 = int_to_ptr.hbm [resolvable:$true] %s12
      %s14 = sshll.u32 [#allocation2], 4
      %s15 = int_to_ptr.vmem [resolvable:$true] %s14
      %20 = dma.hbm_to_vmem [thread:$0]  %s13, 2048, %s15, [#allocation3], 128, 128, 8
    $region5: #{tpu_custom_call.1} parent=1 // pred_fallthru
      _
    // Predicated region
    $region6: #{tpu_custom_call.1} parent=1 // pred_check
      _
    $region7: #{tpu_custom_call.1} parent=1 // pred_check_branch
      %22 = sbr.rel (0) target = $region9
    $region8: #{tpu_custom_call.1} parent=1 // pred_region
      %24 = dma.done [#allocation3], 2048
    $region9: #{tpu_custom_call.1} parent=1 // pred_fallthru
      _
    %v25 = vld [vmem:[#allocation2] sm:$0xff]
    %v26 = vld [vmem:[#allocation2 + $0x8] sm:$0xff]
    %v27 = vld [vmem:[#allocation2 + $0x10] sm:$0xff]
    %v28 = vld [vmem:[#allocation2 + $0x18] sm:$0xff]
    %v29 = vld [vmem:[#allocation2 + $0x20] sm:$0xff]
    %v30 = vld [vmem:[#allocation2 + $0x28] sm:$0xff]
    %v31 = vld [vmem:[#allocation2 + $0x30] sm:$0xff]
    %v32 = vld [vmem:[#allocation2 + $0x38] sm:$0xff]
    %v33 = vld [vmem:[#allocation2 + $0x40] sm:$0xff]
    %v34 = vld [vmem:[#allocation2 + $0x48] sm:$0xff]
    %v35 = vld [vmem:[#allocation2 + $0x50] sm:$0xff]
    %v36 = vld [vmem:[#allocation2 + $0x58] sm:$0xff]
    %v37 = vld [vmem:[#allocation2 + $0x60] sm:$0xff]
    %v38 = vld [vmem:[#allocation2 + $0x68] sm:$0xff]
    %v39 = vld [vmem:[#allocation2 + $0x70] sm:$0xff]
    %v40 = vld [vmem:[#allocation2 + $0x78] sm:$0xff]
    %v41 = vrot.slane %v29, 4
    %vm42 = vcmask 1047556
    %v43 = vsel %vm42, %v41, %v25
    %v44 = vrot.slane %v25, 4
    %v45 = vsel %vm42, %v29, %v44
    %v47 = vunpack.c.l.s4 1983009808
    %v48 = vunpack.c.0.s8 %v47
    %v49 = vperm.slane %v43, %v48
    %v51 = vunpack.c.l.s4 1983009808
    %v52 = vunpack.c.0.s8 %v51
    %v53 = vperm.slane %v45, %v52
    %v54 = vrot.slane %v31, 4
    %v55 = vsel %vm42, %v54, %v27
    %v56 = vrot.slane %v27, 4
    %v57 = vsel %vm42, %v31, %v56
    %v59 = vunpack.c.l.s4 1983009808
    %v60 = vunpack.c.0.s8 %v59
    %v61 = vperm.slane %v55, %v60
    %v63 = vunpack.c.l.s4 1983009808
    %v64 = vunpack.c.0.s8 %v63
    %v65 = vperm.slane %v57, %v64
    %v66 = vrot.slane %v61, 4
    %v67 = vsel %vm42, %v66, %v49
    %v68 = vrot.slane %v49, 4
    %v69 = vsel %vm42, %v61, %v68
    %v71 = vunpack.c.l.s4 1934713408
    %v72 = vunpack.c.0.s8 %v71
    %v73 = vperm.slane %v67, %v72
    %v75 = vunpack.c.l.s4 1934713408
    %v76 = vunpack.c.0.s8 %v75
    %v77 = vperm.slane %v69, %v76
    %v78 = vrot.slane %v65, 4
    %v79 = vsel %vm42, %v78, %v53
    %v80 = vrot.slane %v53, 4
    %v81 = vsel %vm42, %v65, %v80
    %v83 = vunpack.c.l.s4 1934713408
    %v84 = vunpack.c.0.s8 %v83
    %v85 = vperm.slane %v79, %v84
    %v87 = vunpack.c.l.s4 1934713408
    %v88 = vunpack.c.0.s8 %v87
    %v89 = vperm.slane %v81, %v88
    %v90 = vrot.slane %v73, 4
    %v91 = vsel %vm42, 0.0, %v90
    %v92 = vrot.slane %v77, 4
    %v93 = vsel %vm42, 0.0, %v92
    %v94 = vrot.slane %v85, 4
    %v95 = vsel %vm42, 0.0, %v94
    %v96 = vrot.slane %v89, 4
    %v97 = vsel %vm42, 0.0, %v96
    %v98 = vrot.slane %v30, 4
    %v99 = vsel %vm42, %v98, %v26
    %v100 = vrot.slane %v26, 4
    %v101 = vsel %vm42, %v30, %v100
    %v103 = vunpack.c.l.s4 1983009808
    %v104 = vunpack.c.0.s8 %v103
    %v105 = vperm.slane %v99, %v104
    %v107 = vunpack.c.l.s4 1983009808
    %v108 = vunpack.c.0.s8 %v107
    %v109 = vperm.slane %v101, %v108
    %v110 = vrot.slane %v32, 4
    %v111 = vsel %vm42, %v110, %v28
    %v112 = vrot.slane %v28, 4
    %v113 = vsel %vm42, %v32, %v112
    %v115 = vunpack.c.l.s4 1983009808
    %v116 = vunpack.c.0.s8 %v115
    %v117 = vperm.slane %v111, %v116
    %v119 = vunpack.c.l.s4 1983009808
    %v120 = vunpack.c.0.s8 %v119
    %v121 = vperm.slane %v113, %v120
    %v122 = vrot.slane %v117, 4
    %v123 = vsel %vm42, %v122, %v105
    %v124 = vrot.slane %v105, 4
    %v125 = vsel %vm42, %v117, %v124
    %v127 = vunpack.c.l.s4 1934713408
    %v128 = vunpack.c.0.s8 %v127
    %v129 = vperm.slane %v123, %v128
    %v131 = vunpack.c.l.s4 1934713408
    %v132 = vunpack.c.0.s8 %v131
    %v133 = vperm.slane %v125, %v132
    %v134 = vrot.slane %v121, 4
    %v135 = vsel %vm42, %v134, %v109
    %v136 = vrot.slane %v109, 4
    %v137 = vsel %vm42, %v121, %v136
    %v139 = vunpack.c.l.s4 1934713408
    %v140 = vunpack.c.0.s8 %v139
    %v141 = vperm.slane %v135, %v140
    %v143 = vunpack.c.l.s4 1934713408
    %v144 = vunpack.c.0.s8 %v143
    %v145 = vperm.slane %v137, %v144
    %v146 = vrot.slane %v129, 4
    %v147 = vsel %vm42, 0.0, %v146
    %v148 = vrot.slane %v133, 4
    %v149 = vsel %vm42, 0.0, %v148
    %v150 = vrot.slane %v141, 4
    %v151 = vsel %vm42, 0.0, %v150
    %v152 = vrot.slane %v145, 4
    %v153 = vsel %vm42, 0.0, %v152
    %v154 = vrot.slane %v37, 4
    %v155 = vsel %vm42, %v154, %v33
    %v156 = vrot.slane %v33, 4
    %v157 = vsel %vm42, %v37, %v156
    %v159 = vunpack.c.l.s4 1983009808
    %v160 = vunpack.c.0.s8 %v159
    %v161 = vperm.slane %v155, %v160
    %v163 = vunpack.c.l.s4 1983009808
    %v164 = vunpack.c.0.s8 %v163
    %v165 = vperm.slane %v157, %v164
    %v166 = vrot.slane %v39, 4
    %v167 = vsel %vm42, %v166, %v35
    %v168 = vrot.slane %v35, 4
    %v169 = vsel %vm42, %v39, %v168
    %v171 = vunpack.c.l.s4 1983009808
    %v172 = vunpack.c.0.s8 %v171
    %v173 = vperm.slane %v167, %v172
    %v175 = vunpack.c.l.s4 1983009808
    %v176 = vunpack.c.0.s8 %v175
    %v177 = vperm.slane %v169, %v176
    %v178 = vrot.slane %v173, 4
    %v179 = vsel %vm42, %v178, %v161
    %v180 = vrot.slane %v161, 4
    %v181 = vsel %vm42, %v173, %v180
    %v183 = vunpack.c.l.s4 1934713408
    %v184 = vunpack.c.0.s8 %v183
    %v185 = vperm.slane %v179, %v184
    %v187 = vunpack.c.l.s4 1934713408
    %v188 = vunpack.c.0.s8 %v187
    %v189 = vperm.slane %v181, %v188
    %v190 = vrot.slane %v177, 4
    %v191 = vsel %vm42, %v190, %v165
    %v192 = vrot.slane %v165, 4
    %v193 = vsel %vm42, %v177, %v192
    %v195 = vunpack.c.l.s4 1934713408
    %v196 = vunpack.c.0.s8 %v195
    %v197 = vperm.slane %v191, %v196
    %v199 = vunpack.c.l.s4 1934713408
    %v200 = vunpack.c.0.s8 %v199
    %v201 = vperm.slane %v193, %v200
    %v202 = vrot.slane %v185, 4
    %v203 = vsel %vm42, 0.0, %v202
    %v204 = vrot.slane %v189, 4
    %v205 = vsel %vm42, 0.0, %v204
    %v206 = vrot.slane %v197, 4
    %v207 = vsel %vm42, 0.0, %v206
    %v208 = vrot.slane %v201, 4
    %v209 = vsel %vm42, 0.0, %v208
    %v210 = vrot.slane %v38, 4
    %v211 = vsel %vm42, %v210, %v34
    %v212 = vrot.slane %v34, 4
    %v213 = vsel %vm42, %v38, %v212
    %v215 = vunpack.c.l.s4 1983009808
    %v216 = vunpack.c.0.s8 %v215
    %v217 = vperm.slane %v211, %v216
    %v219 = vunpack.c.l.s4 1983009808
    %v220 = vunpack.c.0.s8 %v219
    %v221 = vperm.slane %v213, %v220
    %v222 = vrot.slane %v40, 4
    %v223 = vsel %vm42, %v222, %v36
    %v224 = vrot.slane %v36, 4
    %v225 = vsel %vm42, %v40, %v224
    %v227 = vunpack.c.l.s4 1983009808
    %v228 = vunpack.c.0.s8 %v227
    %v229 = vperm.slane %v223, %v228
    %v231 = vunpack.c.l.s4 1983009808
    %v232 = vunpack.c.0.s8 %v231
    %v233 = vperm.slane %v225, %v232
    %v234 = vrot.slane %v229, 4
    %v235 = vsel %vm42, %v234, %v217
    %v236 = vrot.slane %v217, 4
    %v237 = vsel %vm42, %v229, %v236
    %v239 = vunpack.c.l.s4 1934713408
    %v240 = vunpack.c.0.s8 %v239
    %v241 = vperm.slane %v235, %v240
    %v243 = vunpack.c.l.s4 1934713408
    %v244 = vunpack.c.0.s8 %v243
    %v245 = vperm.slane %v237, %v244
    %v246 = vrot.slane %v233, 4
    %v247 = vsel %vm42, %v246, %v221
    %v248 = vrot.slane %v221, 4
    %v249 = vsel %vm42, %v233, %v248
    %v251 = vunpack.c.l.s4 1934713408
    %v252 = vunpack.c.0.s8 %v251
    %v253 = vperm.slane %v247, %v252
    %v255 = vunpack.c.l.s4 1934713408
    %v256 = vunpack.c.0.s8 %v255
    %v257 = vperm.slane %v249, %v256
    %v258 = vrot.slane %v241, 4
    %v259 = vsel %vm42, 0.0, %v258
    %v260 = vrot.slane %v245, 4
    %v261 = vsel %vm42, 0.0, %v260
    %v262 = vrot.slane %v253, 4
    %v263 = vsel %vm42, 0.0, %v262
    %v264 = vrot.slane %v257, 4
    %v265 = vsel %vm42, 0.0, %v264
    %vm266 = vcmask 125952
    %267 = vst.msk [vmem:[#allocation5] sm:$0xf] %vm266, %v73
    %268 = vst.msk [vmem:[#allocation5 + $0x4] sm:$0xf] %vm266, %v91
    %269 = vst.msk [vmem:[#allocation5 + $0x8] sm:$0xf] %vm266, %v77
    %270 = vst.msk [vmem:[#allocation5 + $0xc] sm:$0xf] %vm266, %v93
    %271 = vst.msk [vmem:[#allocation5 + $0x10] sm:$0xf] %vm266, %v85
    %272 = vst.msk [vmem:[#allocation5 + $0x14] sm:$0xf] %vm266, %v95
    %273 = vst.msk [vmem:[#allocation5 + $0x18] sm:$0xf] %vm266, %v89
    %274 = vst.msk [vmem:[#allocation5 + $0x1c] sm:$0xf] %vm266, %v97
    %275 = vst.msk [vmem:[#allocation5 + $0x20] sm:$0xf] %vm266, %v129
    %276 = vst.msk [vmem:[#allocation5 + $0x24] sm:$0xf] %vm266, %v147
    %277 = vst.msk [vmem:[#allocation5 + $0x28] sm:$0xf] %vm266, %v133
    %278 = vst.msk [vmem:[#allocation5 + $0x2c] sm:$0xf] %vm266, %v149
    %279 = vst.msk [vmem:[#allocation5 + $0x30] sm:$0xf] %vm266, %v141
    %280 = vst.msk [vmem:[#allocation5 + $0x34] sm:$0xf] %vm266, %v151
    %281 = vst.msk [vmem:[#allocation5 + $0x38] sm:$0xf] %vm266, %v145
    %282 = vst.msk [vmem:[#allocation5 + $0x3c] sm:$0xf] %vm266, %v153
    %283 = vst.msk [vmem:[#allocation5 + $0x40] sm:$0xf] %vm266, %v185
    %284 = vst.msk [vmem:[#allocation5 + $0x44] sm:$0xf] %vm266, %v203
    %285 = vst.msk [vmem:[#allocation5 + $0x48] sm:$0xf] %vm266, %v189
    %286 = vst.msk [vmem:[#allocation5 + $0x4c] sm:$0xf] %vm266, %v205
    %287 = vst.msk [vmem:[#allocation5 + $0x50] sm:$0xf] %vm266, %v197
    %288 = vst.msk [vmem:[#allocation5 + $0x54] sm:$0xf] %vm266, %v207
    %289 = vst.msk [vmem:[#allocation5 + $0x58] sm:$0xf] %vm266, %v201
    %290 = vst.msk [vmem:[#allocation5 + $0x5c] sm:$0xf] %vm266, %v209
    %291 = vst.msk [vmem:[#allocation5 + $0x60] sm:$0xf] %vm266, %v241
    %292 = vst.msk [vmem:[#allocation5 + $0x64] sm:$0xf] %vm266, %v259
    %293 = vst.msk [vmem:[#allocation5 + $0x68] sm:$0xf] %vm266, %v245
    %294 = vst.msk [vmem:[#allocation5 + $0x6c] sm:$0xf] %vm266, %v261
    %295 = vst.msk [vmem:[#allocation5 + $0x70] sm:$0xf] %vm266, %v253
    %296 = vst.msk [vmem:[#allocation5 + $0x74] sm:$0xf] %vm266, %v263
    %297 = vst.msk [vmem:[#allocation5 + $0x78] sm:$0xf] %vm266, %v257
    %298 = vst.msk [vmem:[#allocation5 + $0x7c] sm:$0xf] %vm266, %v265
    // Predicated region
    $region10: #{tpu_custom_call.1} parent=1 // pred_check
      _
    $region11: #{tpu_custom_call.1} parent=1 // pred_check_branch
      %300 = sbr.rel (0) target = $region13
    $region12: #{tpu_custom_call.1} parent=1 // pred_region
      %302 = vsyncadd [#allocation4], 0
      %s303 = sshll.u32 [#allocation5], 4
      %s304 = int_to_ptr.vmem [resolvable:$true] %s303
      %s305 = sshll.u32 %s1, 4
      %s306 = int_to_ptr.hbm [resolvable:$true] %s305
      %311 = dma.vmem_to_hbm [thread:$0]  %s304, 2048, %s306, [#allocation4], 64, 64, 4
    $region13: #{tpu_custom_call.1} parent=1 // pred_fallthru
      _
    // Predicated region
    $region14: #{tpu_custom_call.1} parent=1 // pred_check
      _
    $region15: #{tpu_custom_call.1} parent=1 // pred_check_branch
      %313 = sbr.rel (0) target = $region17
    $region16: #{tpu_custom_call.1} parent=1 // pred_region
      %315 = dma.done [#allocation4], 2048
    $region17: #{tpu_custom_call.1} parent=1 // pred_fallthru
      _
    %316 = vsyncpa [#allocation3], 1
    %317 = vsyncpa [#allocation4], 1

</llo_original>
